<compile_context>
chip_gen: v7x
topology: tpu7x:2x2x1
jax: 0.10.0
libtpu: 0.0.40
codegen_flags: <defaults>
</compile_context>

<pallas_src>
import jax
import jax.numpy as jnp
from jax.experimental import pallas as pl
from jax.experimental.pallas import tpu as pltpu


def _round_up(x, m):
    return ((x + m - 1) // m) * m


def value_net_kernel(x_ref, w1_ref, b1_ref, w2_ref, b2_ref, w3_ref, b3_ref,
                     out_ref):
    # Tiny resident weights/biases (~11 KB): read once up front.
    w1 = w1_ref[...]          # (64, D)  bf16
    b1 = b1_ref[...]          # (64, 1)  f32
    w2 = w2_ref[...]          # (32, 64) bf16
    b2 = b2_ref[...]          # (32, 1)  f32
    w3 = w3_ref[...]          # (32, 1)  f32
    b3 = b3_ref[...]          # (1, 1)   f32

    x = x_ref[...]            # (D, TB)  bf16, batch on the lane axis

    # fc1 + ReLU: bf16 MXU matmul, f32 accumulation, f32 epilogue.
    h1 = jnp.dot(w1, x, preferred_element_type=jnp.float32)          # (64, TB)
    h1 = jnp.maximum(h1 + b1, 0.0)

    # fc2 + ReLU.
    h2 = jnp.dot(w2, h1.astype(jnp.bfloat16),
                 preferred_element_type=jnp.float32)                  # (32, TB)
    h2 = jnp.maximum(h2 + b2, 0.0)

    # fc3: VPU multiply + sublane reduce -> lane-dense (1, TB) value row.
    v = jnp.sum(h2 * w3, axis=0, keepdims=True) + b3                  # (1, TB)
    out_ref[...] = v.astype(out_ref.dtype)


def _choose_tile_b(B, D):
    """Batch tile (multiple of 128) derived from a VMEM byte budget."""
    B128 = _round_up(max(B, 1), 128)
    # Live VMEM bytes per batch column (batch on lanes):
    #   (D, TB) bf16 state, double-buffered      : 4 * D
    #   (64, TB) f32 h1 + its bf16 copy for fc2  : 256 + 128
    #   (32, TB) f32 h2                          : 128
    #   (1->8, TB) f32 output, double-buffered   : 64
    bytes_per_col = 4 * D + 576
    vmem_budget = 24 * 1024 * 1024     # headroom under the 32 MiB scoped limit
    tb = max(128, (vmem_budget // bytes_per_col) // 128 * 128)
    tb = min(tb, B128)
    if B128 >= 256:                    # keep >= 2 grid steps for v7x's 2 TCs
        tb = min(tb, _round_up(-(-B128 // 2), 128))
    return tb


def value_net_forward_dxb(x_t, params):
    """Fast path. x_t: (D, B) state in batch-on-lanes layout (any float dtype;
    bf16 avoids an extra cast pass). Returns (B,) float32 value estimates."""
    D, B = x_t.shape
    TB = _choose_tile_b(B, D)
    B_pad = _round_up(B, TB)
    grid = (B_pad // TB,)

    x_t = x_t.astype(jnp.bfloat16)     # no-op if the producer already gave bf16
    if B_pad != B:
        x_t = jnp.pad(x_t, ((0, 0), (0, B_pad - B)))

    # Weights in natural PyTorch (out, in) layout; biases as (out, 1) columns.
    w1 = params["w1"].astype(jnp.bfloat16)                 # (64, D)
    w2 = params["w2"].astype(jnp.bfloat16)                 # (32, 64)
    b1 = params["b1"].astype(jnp.float32).reshape(-1, 1)   # (64, 1)
    b2 = params["b2"].astype(jnp.float32).reshape(-1, 1)   # (32, 1)
    w3 = params["w3"].astype(jnp.float32).reshape(-1, 1)   # (32, 1)
    b3 = params["b3"].astype(jnp.float32).reshape(-1, 1)   # (1, 1)

    weight_bytes = ((w1.size + w2.size) * 2
                    + (b1.size + b2.size + w3.size + b3.size) * 4)
    cost = pl.CostEstimate(
        flops=2 * B_pad * (D * 64 + 64 * 32 + 32),
        transcendentals=0,
        bytes_accessed=B_pad * D * 2 + B_pad * 4 + weight_bytes,
    )

    def _resident(arr):
        # Full-array block, same (all-zeros) block index every step -> stays
        # VMEM-resident across the whole grid.
        return pl.BlockSpec(arr.shape, lambda i, _n=arr.ndim: (0,) * _n)

    out = pl.pallas_call(
        value_net_kernel,
        out_shape=jax.ShapeDtypeStruct((1, B_pad), jnp.float32),
        grid=grid,
        in_specs=[
            pl.BlockSpec((D, TB), lambda i: (0, i)),   # state: streamed, lane-dense
            _resident(w1), _resident(b1),
            _resident(w2), _resident(b2),
            _resident(w3), _resident(b3),
        ],
        out_specs=pl.BlockSpec((1, TB), lambda i: (0, i)),  # lane-dense values
        compiler_params=pltpu.CompilerParams(
            dimension_semantics=("parallel",),
            vmem_limit_bytes=32 * 1024 * 1024),
        cost_estimate=cost,
    )(x_t, w1, b1, w2, b2, w3, b3)

    return out[0, :B]


def value_net_forward(state, params):
    """PyTorch-interface wrapper. state: (B, D) float -> (B, 1) float32 values.
    Does one fused transpose+cast pass to the kernel's (D, B) bf16 layout;
    producers that can emit (D, B) bf16 directly should call
    value_net_forward_dxb and skip it."""
    v = value_net_forward_dxb(state.T.astype(jnp.bfloat16), params)
    return v.reshape(-1, 1)


def init_params(key, dim_state):
    """Mimics PyTorch nn.Linear default init: U(-1/sqrt(fan_in), 1/sqrt(fan_in))
    for weight and bias, in PyTorch's (out_features, in_features) layout."""
    def linear(k, fan_in, fan_out):
        kw, kb = jax.random.split(k)
        bound = 1.0 / jnp.sqrt(jnp.float32(fan_in))
        w = jax.random.uniform(kw, (fan_out, fan_in), jnp.float32,
                               minval=-bound, maxval=bound)
        b = jax.random.uniform(kb, (fan_out,), jnp.float32,
                               minval=-bound, maxval=bound)
        return w, b

    k1, k2, k3 = jax.random.split(key, 3)
    w1, b1 = linear(k1, dim_state, 64)
    w2, b2 = linear(k2, 64, 32)
    w3, b3 = linear(k3, 32, 1)
    return {"w1": w1, "b1": b1, "w2": w2, "b2": b2, "w3": w3, "b3": b3}


def value_net_ref(state, p):
    """Pure-JAX reference with the same bf16-MXU / f32-epilogue scheme."""
    x = state.astype(jnp.bfloat16)
    h = jnp.dot(x, p["w1"].astype(jnp.bfloat16).T,
                preferred_element_type=jnp.float32)
    h = jnp.maximum(h + p["b1"], 0.0)
    h = jnp.dot(h.astype(jnp.bfloat16), p["w2"].astype(jnp.bfloat16).T,
                preferred_element_type=jnp.float32)
    h = jnp.maximum(h + p["b2"], 0.0)
    return h @ p["w3"].T + p["b3"]


if __name__ == "__main__":
    key = jax.random.PRNGKey(0)
    k_param, k_state = jax.random.split(key)

    dim_state = 8      # small continuous-control observation
    batch = 4

    params = init_params(k_param, dim_state)
    state = jax.random.normal(k_state, (batch, dim_state), jnp.float32)

    out = value_net_forward(state, params)
    out = jax.block_until_ready(out)

    ref = value_net_ref(state, params)
    assert out.shape == (batch, 1), out.shape
    assert jnp.allclose(out, ref, atol=2e-3, rtol=2e-3), (out, ref)

    print("KERNEL_OK")
</pallas_src>

<mosaic_0001>
module attributes {stable_mosaic.version = 11 : i64} {
  func.func @value_net_kernel(%arg0: i32, %arg1: memref<8x128xbf16, #tpu.memory_space<vmem>>, %arg2: memref<64x8xbf16, #tpu.memory_space<vmem>>, %arg3: memref<64x1xf32, #tpu.memory_space<vmem>>, %arg4: memref<32x64xbf16, #tpu.memory_space<vmem>>, %arg5: memref<32x1xf32, #tpu.memory_space<vmem>>, %arg6: memref<32x1xf32, #tpu.memory_space<vmem>>, %arg7: memref<1x1xf32, #tpu.memory_space<vmem>>, %arg8: memref<1x128xf32, #tpu.memory_space<vmem>>) attributes {dimension_semantics = [#tpu.dimension_semantics<parallel>], iteration_bounds = array<i64: 1>, scalar_prefetch = 0 : i64, scratch_operands = 0 : i64, tpu.core_type = #tpu.core_type<tc>, window_params = [{transform_indices = @transform_0, window_bounds = array<i64: 8, 128>}, {pipeline_mode = #tpu.pipeline_mode<synchronous>, transform_indices = @transform_1, window_bounds = array<i64: 64, 8>}, {pipeline_mode = #tpu.pipeline_mode<synchronous>, transform_indices = @transform_2, window_bounds = array<i64: 64, 1>}, {pipeline_mode = #tpu.pipeline_mode<synchronous>, transform_indices = @transform_3, window_bounds = array<i64: 32, 64>}, {pipeline_mode = #tpu.pipeline_mode<synchronous>, transform_indices = @transform_4, window_bounds = array<i64: 32, 1>}, {pipeline_mode = #tpu.pipeline_mode<synchronous>, transform_indices = @transform_5, window_bounds = array<i64: 32, 1>}, {pipeline_mode = #tpu.pipeline_mode<synchronous>, transform_indices = @transform_6, window_bounds = array<i64: 1, 1>}, {transform_indices = @transform_7, window_bounds = array<i64: 1, 128>}]} {
    %c0 = arith.constant 0 : index
    %c0_0 = arith.constant 0 : index
    %0 = vector.load %arg2[%c0, %c0_0] : memref<64x8xbf16, #tpu.memory_space<vmem>>, vector<64x8xbf16>
    %c0_1 = arith.constant 0 : index
    %c0_2 = arith.constant 0 : index
    %1 = vector.load %arg3[%c0_1, %c0_2] : memref<64x1xf32, #tpu.memory_space<vmem>>, vector<64x1xf32>
    %c0_3 = arith.constant 0 : index
    %c0_4 = arith.constant 0 : index
    %2 = vector.load %arg4[%c0_3, %c0_4] : memref<32x64xbf16, #tpu.memory_space<vmem>>, vector<32x64xbf16>
    %c0_5 = arith.constant 0 : index
    %c0_6 = arith.constant 0 : index
    %3 = vector.load %arg5[%c0_5, %c0_6] : memref<32x1xf32, #tpu.memory_space<vmem>>, vector<32x1xf32>
    %c0_7 = arith.constant 0 : index
    %c0_8 = arith.constant 0 : index
    %4 = vector.load %arg6[%c0_7, %c0_8] : memref<32x1xf32, #tpu.memory_space<vmem>>, vector<32x1xf32>
    %c0_9 = arith.constant 0 : index
    %c0_10 = arith.constant 0 : index
    %5 = vector.load %arg7[%c0_9, %c0_10] : memref<1x1xf32, #tpu.memory_space<vmem>>, vector<1x1xf32>
    %c0_11 = arith.constant 0 : index
    %c0_12 = arith.constant 0 : index
    %6 = vector.load %arg1[%c0_11, %c0_12] : memref<8x128xbf16, #tpu.memory_space<vmem>>, vector<8x128xbf16>
    %cst = arith.constant dense<0.000000e+00> : vector<64x128xf32>
    %7 = tpu.matmul %0, %6, %cst {dimension_numbers = #tpu.dot_dimension_numbers<[1], [0], [0], [1], [0, 0, 1, 1], [], []>} : vector<64x8xbf16>, vector<8x128xbf16>, vector<64x128xf32> -> vector<64x128xf32>
    %8 = vector.broadcast %1 : vector<64x1xf32> to vector<64x128xf32>
    %9 = arith.addf %7, %8 : vector<64x128xf32>
    %cst_13 = arith.constant 0.000000e+00 : f32
    %10 = vector.broadcast %cst_13 : f32 to vector<64x128xf32>
    %11 = arith.maximumf %9, %10 : vector<64x128xf32>
    %12 = arith.truncf %11 : vector<64x128xf32> to vector<64x128xbf16>
    %cst_14 = arith.constant dense<0.000000e+00> : vector<32x128xf32>
    %13 = tpu.matmul %2, %12, %cst_14 {dimension_numbers = #tpu.dot_dimension_numbers<[1], [0], [0], [1], [0, 0, 1, 1], [], []>} : vector<32x64xbf16>, vector<64x128xbf16>, vector<32x128xf32> -> vector<32x128xf32>
    %14 = vector.broadcast %3 : vector<32x1xf32> to vector<32x128xf32>
    %15 = arith.addf %13, %14 : vector<32x128xf32>
    %cst_15 = arith.constant 0.000000e+00 : f32
    %16 = vector.broadcast %cst_15 : f32 to vector<32x128xf32>
    %17 = arith.maximumf %15, %16 : vector<32x128xf32>
    %18 = vector.broadcast %4 : vector<32x1xf32> to vector<32x128xf32>
    %19 = arith.mulf %17, %18 : vector<32x128xf32>
    %cst_16 = arith.constant dense<0.000000e+00> : vector<128xf32>
    %20 = vector.multi_reduction <add>, %19, %cst_16 [0] : vector<32x128xf32> to vector<128xf32>
    %21 = vector.shape_cast %20 : vector<128xf32> to vector<1x128xf32>
    %22 = vector.broadcast %5 : vector<1x1xf32> to vector<1x128xf32>
    %23 = arith.addf %21, %22 : vector<1x128xf32>
    %c0_17 = arith.constant 0 : index
    %c0_18 = arith.constant 0 : index
    %24 = vector.load %arg8[%c0_17, %c0_18] : memref<1x128xf32, #tpu.memory_space<vmem>>, vector<1x128xf32>
    tpu.vector_store %arg8[%c0_17, %c0_18], %23 {strides = array<i32>} : memref<1x128xf32, #tpu.memory_space<vmem>>, vector<1x128xf32>,
    return
  }
  func.func @transform_0(%arg0: i32) -> (i32, i32) {
    %c0_i32 = arith.constant 0 : i32
    %c0_i32_0 = arith.constant 0 : i32
    return %c0_i32, %arg0 : i32, i32
  }
  func.func @transform_1(%arg0: i32) -> (i32, i32) {
    %c0_i32 = arith.constant 0 : i32
    %c0_i32_0 = arith.constant 0 : i32
    %c0_i32_1 = arith.constant 0 : i32
    return %c0_i32, %c0_i32_0 : i32, i32
  }
  func.func @transform_2(%arg0: i32) -> (i32, i32) {
    %c0_i32 = arith.constant 0 : i32
    %c0_i32_0 = arith.constant 0 : i32
    %c0_i32_1 = arith.constant 0 : i32
    return %c0_i32, %c0_i32_0 : i32, i32
  }
  func.func @transform_3(%arg0: i32) -> (i32, i32) {
    %c0_i32 = arith.constant 0 : i32
    %c0_i32_0 = arith.constant 0 : i32
    %c0_i32_1 = arith.constant 0 : i32
    return %c0_i32, %c0_i32_0 : i32, i32
  }
  func.func @transform_4(%arg0: i32) -> (i32, i32) {
    %c0_i32 = arith.constant 0 : i32
    %c0_i32_0 = arith.constant 0 : i32
    %c0_i32_1 = arith.constant 0 : i32
    return %c0_i32, %c0_i32_0 : i32, i32
  }
  func.func @transform_5(%arg0: i32) -> (i32, i32) {
    %c0_i32 = arith.constant 0 : i32
    %c0_i32_0 = arith.constant 0 : i32
    %c0_i32_1 = arith.constant 0 : i32
    return %c0_i32, %c0_i32_0 : i32, i32
  }
  func.func @transform_6(%arg0: i32) -> (i32, i32) {
    %c0_i32 = arith.constant 0 : i32
    %c0_i32_0 = arith.constant 0 : i32
    %c0_i32_1 = arith.constant 0 : i32
    return %c0_i32, %c0_i32_0 : i32, i32
  }
  func.func @transform_7(%arg0: i32) -> (i32, i32) {
    %c0_i32 = arith.constant 0 : i32
    %c0_i32_0 = arith.constant 0 : i32
    return %c0_i32, %arg0 : i32, i32
  }
}

</mosaic_0001>

<llo_original>
// kernel: tpu_custom_call.1
$region0: #{tpu_custom_call.1}
  #allocation0 [shape = 'u32[]', space=smem, size = 0x4, offset = 0x4, fixed_abs, tag = 'smem constant byte address 0x4 - core index']
  #allocation1 [shape = 'u32[144,128]{1,0:T(1,128)}', space=vmem, size = 0x12000, scoped, tag = 'internal scratch']
  #allocation2 [shape = 'f32[1,1]{1,0:T(1,128)S(1)}', space=vmem, size = 0x200, scoped, tag = 'scoped memory for tpu_custom_call.1']
  %s0 = inlined_call_operand.vmem [shape: bf16[8,128], index: 0, kind: input, shape index: {}]
  %s1 = inlined_call_operand.vmem [shape: bf16[64,8], index: 1, kind: input, shape index: {}]
  %s2 = inlined_call_operand.vmem [shape: f32[64,1], index: 2, kind: input, shape index: {}]
  %s3 = inlined_call_operand.vmem [shape: bf16[32,64], index: 3, kind: input, shape index: {}]
  %s4 = inlined_call_operand.vmem [shape: f32[32,1], index: 4, kind: input, shape index: {}]
  %s5 = inlined_call_operand.vmem [shape: f32[32,1], index: 5, kind: input, shape index: {}]
  %s6 = inlined_call_operand.<no memory space> [shape: f32[1,1], index: 6, kind: input, shape index: {}]
  %s7 = inlined_call_operand.hbm [shape: f32[1,128], index: 7, kind: output, shape index: {}]
  %s8 = sld [smem:[#allocation0]]
  $region38: #{tpu_custom_call.1} parent=0
    _
  %s10 = ssub.s32 1, %s8
  %s11 = scalar_select 0, %s10, %s8
  %v12 = vstv %s6
  %13 = vst [vmem:[#allocation2] sm:$0x1] %v12
  $region1: #{tpu_custom_call.1} parent=0
    #allocation3 [shape = 'u8[512]{0}', space=vmem, size = 0x400, scoped, tag = 'output window, operand 0, single buffered']
    #allocation4 [shape = 's32[1]{0}', space=sflag, size = 0x4, scoped, tag = 'scoped memory for tpu_custom_call.1']
    %14 = vsyncpa [#allocation4], 0
    // Predicated region
    $region2: #{tpu_custom_call.1} parent=1 // pred_check
      _
    $region3: #{tpu_custom_call.1} parent=1 // pred_check_branch
      %16 = sbr.rel (0) target = $region5
    $region4: #{tpu_custom_call.1} parent=1 // pred_region
      _
    $region5: #{tpu_custom_call.1} parent=1 // pred_fallthru
      _
    // Predicated region
    $region6: #{tpu_custom_call.1} parent=1 // pred_check
      _
    $region7: #{tpu_custom_call.1} parent=1 // pred_check_branch
      %18 = sbr.rel (0) target = $region9
    $region8: #{tpu_custom_call.1} parent=1 // pred_region
      _
    $region9: #{tpu_custom_call.1} parent=1 // pred_fallthru
      _
    // Predicated region
    $region10: #{tpu_custom_call.1} parent=1 // pred_check
      _
    $region11: #{tpu_custom_call.1} parent=1 // pred_check_branch
      %20 = sbr.rel (0) target = $region13
    $region12: #{tpu_custom_call.1} parent=1 // pred_region
      _
    $region13: #{tpu_custom_call.1} parent=1 // pred_fallthru
      _
    // Predicated region
    $region14: #{tpu_custom_call.1} parent=1 // pred_check
      _
    $region15: #{tpu_custom_call.1} parent=1 // pred_check_branch
      %22 = sbr.rel (0) target = $region17
    $region16: #{tpu_custom_call.1} parent=1 // pred_region
      _
    $region17: #{tpu_custom_call.1} parent=1 // pred_fallthru
      _
    // Predicated region
    $region18: #{tpu_custom_call.1} parent=1 // pred_check
      _
    $region19: #{tpu_custom_call.1} parent=1 // pred_check_branch
      %24 = sbr.rel (0) target = $region21
    $region20: #{tpu_custom_call.1} parent=1 // pred_region
      _
    $region21: #{tpu_custom_call.1} parent=1 // pred_fallthru
      _
    // Predicated region
    $region22: #{tpu_custom_call.1} parent=1 // pred_check
      _
    $region23: #{tpu_custom_call.1} parent=1 // pred_check_branch
      %26 = sbr.rel (0) target = $region25
    $region24: #{tpu_custom_call.1} parent=1 // pred_region
      _
    $region25: #{tpu_custom_call.1} parent=1 // pred_fallthru
      _
    // Predicated region
    $region26: #{tpu_custom_call.1} parent=1 // pred_check
      _
    $region27: #{tpu_custom_call.1} parent=1 // pred_check_branch
      %28 = sbr.rel (0) target = $region29
    $region28: #{tpu_custom_call.1} parent=1 // pred_region
      _
    $region29: #{tpu_custom_call.1} parent=1 // pred_fallthru
      _
    %v30 = vld [vmem:[%s1] sm:$0xf]
    %v31 = vld [vmem:[%s1 + $0x4] sm:$0xf]
    %v32 = vld [vmem:[%s1 + $0x8] sm:$0xf]
    %v33 = vld [vmem:[%s1 + $0xc] sm:$0xf]
    %v34 = vld [vmem:[%s1 + $0x10] sm:$0xf]
    %v35 = vld [vmem:[%s1 + $0x14] sm:$0xf]
    %v36 = vld [vmem:[%s1 + $0x18] sm:$0xf]
    %v37 = vld [vmem:[%s1 + $0x1c] sm:$0xf]
    %v38 = vld [vmem:[%s2] sm:$0xff]
    %v39 = vld [vmem:[%s2 + $0x8] sm:$0xff]
    %v40 = vld [vmem:[%s2 + $0x10] sm:$0xff]
    %v41 = vld [vmem:[%s2 + $0x18] sm:$0xff]
    %v42 = vld [vmem:[%s2 + $0x20] sm:$0xff]
    %v43 = vld [vmem:[%s2 + $0x28] sm:$0xff]
    %v44 = vld [vmem:[%s2 + $0x30] sm:$0xff]
    %v45 = vld [vmem:[%s2 + $0x38] sm:$0xff]
    %v46 = vld [vmem:[%s3] sm:$0xf]
    %v47 = vld [vmem:[%s3 + $0x4] sm:$0xf]
    %v48 = vld [vmem:[%s3 + $0x8] sm:$0xf]
    %v49 = vld [vmem:[%s3 + $0xc] sm:$0xf]
    %v50 = vld [vmem:[%s4] sm:$0xff]
    %v51 = vld [vmem:[%s4 + $0x8] sm:$0xff]
    %v52 = vld [vmem:[%s4 + $0x10] sm:$0xff]
    %v53 = vld [vmem:[%s4 + $0x18] sm:$0xff]
    %v54 = vld [vmem:[%s5] sm:$0xff]
    %v55 = vld [vmem:[%s5 + $0x8] sm:$0xff]
    %v56 = vld [vmem:[%s5 + $0x10] sm:$0xff]
    %v57 = vld [vmem:[%s5 + $0x18] sm:$0xff]
    %v58 = vld [vmem:[#allocation2] sm:$0x1]
    %v59 = vld [vmem:[%s0] sm:$0xf]
    %61 = vset.pattern.permute.xlu0 0
    %62 = vperm.xlu0 %61, %v38
    %v63 = vpop.permute.xlu0 %62
    %66 = vset.pattern.permute.xlu0 0
    %67 = vperm.xlu0 %66, %v39
    %v68 = vpop.permute.xlu0 %67
    %71 = vset.pattern.permute.xlu0 0
    %72 = vperm.xlu0 %71, %v40
    %v73 = vpop.permute.xlu0 %72
    %76 = vset.pattern.permute.xlu0 0
    %77 = vperm.xlu0 %76, %v41
    %v78 = vpop.permute.xlu0 %77
    %81 = vset.pattern.permute.xlu0 0
    %82 = vperm.xlu0 %81, %v42
    %v83 = vpop.permute.xlu0 %82
    %86 = vset.pattern.permute.xlu0 0
    %87 = vperm.xlu0 %86, %v43
    %v88 = vpop.permute.xlu0 %87
    %91 = vset.pattern.permute.xlu0 0
    %92 = vperm.xlu0 %91, %v44
    %v93 = vpop.permute.xlu0 %92
    %96 = vset.pattern.permute.xlu0 0
    %97 = vperm.xlu0 %96, %v45
    %v98 = vpop.permute.xlu0 %97
    %v108 = vunpack.c.l.b16 %v30
    %v109 = vunpack.c.l.b16 %v31
    %v110 = vunpack.c.l.b16 %v32
    %v111 = vunpack.c.l.b16 %v33
    %v112 = vunpack.c.l.b16 %v34
    %v113 = vunpack.c.l.b16 %v35
    %v114 = vunpack.c.l.b16 %v36
    %v115 = vunpack.c.l.b16 %v37
    %v116 = vpack.c.b16 %v109, %v108
    %v117 = vpack.c.b16 %v111, %v110
    %v118 = vpack.c.b16 %v113, %v112
    %v119 = vpack.c.b16 %v115, %v114
    %vm120 = vcmask 64512
    %v122 = vsel %vm120, %v116, 0
    %v125 = vsel %vm120, %v117, 0
    %v128 = vsel %vm120, %v118, 0
    %v131 = vsel %vm120, %v119, 0
    %vm133 = vcmask 1043456
    %v135 = vsel %vm133, %v59, 0
    %137 = vmatprep.subr.bf16.mxu0 0
    %138 = vmatpush1.bf16.msra.mxu0 %v135
    %139 = vmatprep.subr.bf16.mxu0 0
    %140 = vmatpush1.bf16.msra.mxu0 0
    %141 = vmatprep.subr.bf16.mxu0 0
    %142 = vmatpush1.bf16.msra.mxu0 0
    %143 = vmatprep.subr.bf16.mxu0 0
    %144 = vmatpush1.bf16.msra.mxu0 0
    %145 = vmatprep.subr.bf16.mxu0 0
    %146 = vmatpush1.bf16.msra.mxu0 0
    %147 = vmatprep.subr.bf16.mxu0 0
    %148 = vmatpush1.bf16.msra.mxu0 0
    %149 = vmatprep.subr.bf16.mxu0 0
    %150 = vmatpush1.bf16.msra.mxu0 0
    %151 = vmatprep.subr.bf16.mxu0 0
    %152 = vmatpush1.bf16.msra.mxu0 0
    %153 = vmatprep.subr.bf16.mxu0 0
    %154 = vmatpush1.bf16.msra.mxu0 0
    %155 = vmatprep.subr.bf16.mxu0 0
    %156 = vmatpush1.bf16.msra.mxu0 0
    %157 = vmatprep.subr.bf16.mxu0 0
    %158 = vmatpush1.bf16.msra.mxu0 0
    %159 = vmatprep.subr.bf16.mxu0 0
    %160 = vmatpush1.bf16.msra.mxu0 0
    %161 = vmatprep.subr.bf16.mxu0 0
    %162 = vmatpush1.bf16.msra.mxu0 0
    %163 = vmatprep.subr.bf16.mxu0 0
    %164 = vmatpush1.bf16.msra.mxu0 0
    %165 = vmatprep.subr.bf16.mxu0 0
    %166 = vmatpush1.bf16.msra.mxu0 0
    %167 = vmatprep.subr.bf16.mxu0 0
    %168 = vmatpush1.bf16.msra.mxu0 0
    %169 = vmatprep.mubr.bf16.mxu0 0
    %170 = vmatmul.mubr.bf16.gmra.mrb[0].mxu0 %v122
    %v171 = vpop.f32.mrb[0].mxu0
    %v172 = vadd.f32 %v63, %v171
    %v173 = vpop.f32.mrb[0].mxu0
    %v174 = vpop.f32.mrb[0].mxu0
    %v175 = vadd.f32 %v68, %v174
    %v176 = vpop.f32.mrb[0].mxu0
    %177 = vmatprep.mubr.bf16.mxu0 0
    %178 = vmatmul.mubr.bf16.gmra.mrb[0].mxu0 %v125
    %v179 = vpop.f32.mrb[0].mxu0
    %v180 = vadd.f32 %v73, %v179
    %v181 = vpop.f32.mrb[0].mxu0
    %v182 = vpop.f32.mrb[0].mxu0
    %v183 = vadd.f32 %v78, %v182
    %v184 = vpop.f32.mrb[0].mxu0
    %185 = vmatprep.mubr.bf16.mxu0 0
    %186 = vmatmul.mubr.bf16.gmra.mrb[0].mxu0 %v128
    %v187 = vpop.f32.mrb[0].mxu0
    %v188 = vadd.f32 %v83, %v187
    %v189 = vpop.f32.mrb[0].mxu0
    %v190 = vpop.f32.mrb[0].mxu0
    %v191 = vadd.f32 %v88, %v190
    %v192 = vpop.f32.mrb[0].mxu0
    %193 = vmatprep.mubr.bf16.mxu0 0
    %194 = vmatmul.mubr.bf16.gmra.mrb[0].mxu0 %v131
    %v195 = vpop.f32.mrb[0].mxu0
    %v196 = vadd.f32 %v93, %v195
    %v197 = vpop.f32.mrb[0].mxu0
    %v198 = vpop.f32.mrb[0].mxu0
    %v199 = vadd.f32 %v98, %v198
    %v200 = vpop.f32.mrb[0].mxu0
    %201 = vdwg.mxu0
    %v202 = vmax.f32 %v172, 0.0
    %v203 = vmax.f32 %v175, 0.0
    %v204 = vmax.f32 %v180, 0.0
    %v205 = vmax.f32 %v183, 0.0
    %v206 = vmax.f32 %v188, 0.0
    %v207 = vmax.f32 %v191, 0.0
    %v208 = vmax.f32 %v196, 0.0
    %v209 = vmax.f32 %v199, 0.0
    %v210 = vpack.c.bf16 %v203, %v202
    %v211 = vpack.c.bf16 %v205, %v204
    %v212 = vpack.c.bf16 %v207, %v206
    %v213 = vpack.c.bf16 %v209, %v208
    %215 = vset.pattern.permute.xlu0 0
    %216 = vperm.xlu0 %215, %v50
    %v217 = vpop.permute.xlu0 %216
    %220 = vset.pattern.permute.xlu0 0
    %221 = vperm.xlu0 %220, %v51
    %v222 = vpop.permute.xlu0 %221
    %225 = vset.pattern.permute.xlu0 0
    %226 = vperm.xlu0 %225, %v52
    %v227 = vpop.permute.xlu0 %226
    %230 = vset.pattern.permute.xlu0 0
    %231 = vperm.xlu0 %230, %v53
    %v232 = vpop.permute.xlu0 %231
    %v238 = vunpack.c.l.b16 %v46
    %v239 = vunpack.c.l.b16 %v47
    %v240 = vunpack.c.l.b16 %v48
    %v241 = vunpack.c.l.b16 %v49
    %v242 = vpack.c.b16 %v239, %v238
    %v243 = vpack.c.b16 %v241, %v240
    %vm244 = vcmask 523264
    %v246 = vsel %vm244, %v242, 0
    %v249 = vsel %vm244, %v243, 0
    %251 = vmatprep.subr.bf16.mxu0 0
    %252 = vmatpush1.bf16.msra.mxu0 %v210
    %253 = vmatprep.subr.bf16.mxu0 0
    %254 = vmatpush1.bf16.msra.mxu0 %v211
    %255 = vmatprep.subr.bf16.mxu0 0
    %256 = vmatpush1.bf16.msra.mxu0 %v212
    %257 = vmatprep.subr.bf16.mxu0 0
    %258 = vmatpush1.bf16.msra.mxu0 %v213
    %259 = vmatprep.subr.bf16.mxu0 0
    %260 = vmatpush1.bf16.msra.mxu0 0
    %261 = vmatprep.subr.bf16.mxu0 0
    %262 = vmatpush1.bf16.msra.mxu0 0
    %263 = vmatprep.subr.bf16.mxu0 0
    %264 = vmatpush1.bf16.msra.mxu0 0
    %265 = vmatprep.subr.bf16.mxu0 0
    %266 = vmatpush1.bf16.msra.mxu0 0
    %267 = vmatprep.subr.bf16.mxu0 0
    %268 = vmatpush1.bf16.msra.mxu0 0
    %269 = vmatprep.subr.bf16.mxu0 0
    %270 = vmatpush1.bf16.msra.mxu0 0
    %271 = vmatprep.subr.bf16.mxu0 0
    %272 = vmatpush1.bf16.msra.mxu0 0
    %273 = vmatprep.subr.bf16.mxu0 0
    %274 = vmatpush1.bf16.msra.mxu0 0
    %275 = vmatprep.subr.bf16.mxu0 0
    %276 = vmatpush1.bf16.msra.mxu0 0
    %277 = vmatprep.subr.bf16.mxu0 0
    %278 = vmatpush1.bf16.msra.mxu0 0
    %279 = vmatprep.subr.bf16.mxu0 0
    %280 = vmatpush1.bf16.msra.mxu0 0
    %281 = vmatprep.subr.bf16.mxu0 0
    %282 = vmatpush1.bf16.msra.mxu0 0
    %283 = vmatprep.mubr.bf16.mxu0 0
    %284 = vmatmul.mubr.bf16.gmra.mrb[0].mxu0 %v246
    %v285 = vpop.f32.mrb[0].mxu0
    %v286 = vadd.f32 %v217, %v285
    %v287 = vpop.f32.mrb[0].mxu0
    %v288 = vpop.f32.mrb[0].mxu0
    %v289 = vadd.f32 %v222, %v288
    %v290 = vpop.f32.mrb[0].mxu0
    %291 = vmatprep.mubr.bf16.mxu0 0
    %292 = vmatmul.mubr.bf16.gmra.mrb[0].mxu0 %v249
    %v293 = vpop.f32.mrb[0].mxu0
    %v294 = vadd.f32 %v227, %v293
    %v295 = vpop.f32.mrb[0].mxu0
    %v296 = vpop.f32.mrb[0].mxu0
    %v297 = vadd.f32 %v232, %v296
    %v298 = vpop.f32.mrb[0].mxu0
    %299 = vdwg.mxu0
    %v300 = vmax.f32 %v286, 0.0
    %v301 = vmax.f32 %v289, 0.0
    %v302 = vmax.f32 %v294, 0.0
    %v303 = vmax.f32 %v297, 0.0
    %305 = vset.pattern.permute.xlu0 0
    %306 = vperm.xlu0 %305, %v54
    %v307 = vpop.permute.xlu0 %306
    %310 = vset.pattern.permute.xlu0 0
    %311 = vperm.xlu0 %310, %v55
    %v312 = vpop.permute.xlu0 %311
    %315 = vset.pattern.permute.xlu0 0
    %316 = vperm.xlu0 %315, %v56
    %v317 = vpop.permute.xlu0 %316
    %320 = vset.pattern.permute.xlu0 0
    %321 = vperm.xlu0 %320, %v57
    %v322 = vpop.permute.xlu0 %321
    %v324 = vmul.f32 %v300, %v307
    %v325 = vmul.f32 %v301, %v312
    %v326 = vmul.f32 %v302, %v317
    %v327 = vmul.f32 %v303, %v322
    %v328 = vadd.f32 %v324, %v325
    %v329 = vadd.f32 %v328, %v326
    %v330 = vadd.f32 %v329, %v327
    %v331 = vrot.slane %v330, 4
    %v332 = vadd.f32 %v330, %v331
    %v333 = vrot.slane %v332, 2
    %v334 = vadd.f32 %v332, %v333
    %v335 = vrot.slane %v334, 1
    %v336 = vadd.f32 %v334, %v335
    %338 = vset.pattern.permute.xlu0 0
    %339 = vperm.xlu0 %338, %v58
    %v340 = vpop.permute.xlu0 %339
    %v342 = vlaneseq
    %v343 = vshrl.u32 %v342, 7
    %v344 = vsub.s32 0, %v343
    %v345 = vrot.slane %v340, %v344
    %v346 = vadd.f32 %v336, %v345
    %347 = vst [vmem:[#allocation3] sm:$0x1] %v346
    // Predicated region
    $region30: #{tpu_custom_call.1} parent=1 // pred_check
      _
    $region31: #{tpu_custom_call.1} parent=1 // pred_check_branch
      %349 = sbr.rel (0) target = $region33
    $region32: #{tpu_custom_call.1} parent=1 // pred_region
      %s351 = ssub.s32 16, 16
      %352 = vsyncadd [#allocation4], %s351
      %s354 = sshll.u32 [#allocation3], 4
      %s355 = int_to_ptr.vmem [resolvable:$true] %s354
      %357 = dma.vmem_to_hbm [thread:$0]  %s355, 16, %s7, [#allocation4]
    $region33: #{tpu_custom_call.1} parent=1 // pred_fallthru
      _
    // Predicated region
    $region34: #{tpu_custom_call.1} parent=1 // pred_check
      _
    $region35: #{tpu_custom_call.1} parent=1 // pred_check_branch
      %359 = sbr.rel (0) target = $region37
    $region36: #{tpu_custom_call.1} parent=1 // pred_region
      %360 = dma.done [#allocation4], 16
    $region37: #{tpu_custom_call.1} parent=1 // pred_fallthru
      _
    %361 = vsyncpa [#allocation4], 1

</llo_original>
